<compile_context>
chip_gen: v5e
topology: v5e:2x2
jax: 0.10.0
libtpu: 0.0.40
codegen_flags: <defaults>
</compile_context>

<pallas_src>
import jax
import jax.numpy as jnp
from jax.experimental import pallas as pl
from jax.experimental.pallas import tpu as pltpu


def _round_up(n, m):
    return ((n + m - 1) // m) * m


def _choose_tile(b_pad, block_rows, quantum):
    """Largest TB <= block_rows with TB % quantum == 0 and b_pad % TB == 0,
    preferring >=2 grid steps (v7x megacore) whenever b_pad allows it."""
    want_blocks = 2 if b_pad >= 2 * quantum else 1
    g = want_blocks
    while b_pad // g >= quantum:
        if b_pad % g == 0:
            tb = b_pad // g
            if tb <= block_rows and tb % quantum == 0:
                return tb
        g += 1
    return quantum


def classifier_kernel(x_ref,
                      w1_ref, b1_ref,
                      w2_ref, b2_ref,
                      w3_ref, b3_ref,
                      o_ref):
    """Fused 3-layer MLP (eval-mode BN pre-folded); feature-major activations.

    x_ref:  [TB, F]   f32 (streamed batch tile)
    w1_ref: [H,  F]   b1_ref: [H, 1]
    w2_ref: [H2, H]   b2_ref: [H2, 1]
    w3_ref: [1,  H2]  b3_ref: [1, 1]
    o_ref:  [1,  TB]  (batch on lanes -> dense, unmasked stores)
    """
    x = x_ref[...]                                                     # [TB, F]

    # Layer 1: contract F on both operands -> [H, TB] (batch on lanes).
    h = jax.lax.dot_general(
        w1_ref[...], x,
        dimension_numbers=(((1,), (1,)), ((), ())),
        preferred_element_type=jnp.float32)                            # [H, TB]
    h = jnp.maximum(h + b1_ref[...], 0.0)          # Dropout = identity in eval

    # Layer 2: standard matmul [H2, H] @ [H, TB] -> [H2, TB].
    h = jnp.dot(w2_ref[...], h, preferred_element_type=jnp.float32)   # [H2, TB]
    h = jnp.maximum(h + b2_ref[...], 0.0)          # Dropout = identity in eval

    # Layer 3: [1, H2] @ [H2, TB] -> lane-dense (1, TB) logits row.
    logits = jnp.dot(w3_ref[...], h, preferred_element_type=jnp.float32)
    logits = logits + b3_ref[...]
    o_ref[...] = jax.nn.sigmoid(logits).astype(o_ref.dtype)


def prepare_params(p):
    """One-time (model-load) prep: fold eval-mode BatchNorm into the linear
    layers and transpose to the feature-major layouts the kernel expects."""
    w1t = (p["w1"] * p["bn1_scale"]).T                                 # [H, F]
    b1f = (p["b1"] * p["bn1_scale"] + p["bn1_shift"]).T                # [H, 1]
    w2t = (p["w2"] * p["bn2_scale"]).T                                 # [H2, H]
    b2f = (p["b2"] * p["bn2_scale"] + p["bn2_shift"]).T                # [H2, 1]
    w3t = p["w3"].T                                                    # [1, H2]
    b3 = p["b3"]                                                       # [1, 1]
    return dict(w1t=w1t, b1f=b1f, w2t=w2t, b2f=b2f, w3t=w3t, b3=b3)


def classifier_forward(x, folded, *, block_rows=2048):
    """Batch-tiled, pipelined pallas_call. Returns sigmoid probs, shape [B, 1]."""
    B, F = x.shape

    # Pad only to a multiple of 256 (multiple of 128 for v5e, 256 for v6e/v7x
    # MXU/vst granules); pick TB dividing B_pad so no tile work is wasted.
    quantum = 256
    B_pad = _round_up(B, quantum)
    TB = _choose_tile(B_pad, block_rows, quantum)
    if B_pad != B:
        x = jnp.pad(x, ((0, B_pad - B), (0, 0)))
    grid = (B_pad // TB,)

    def const_spec(arr):
        # Constant block index -> parameter fetched once, resident across grid.
        return pl.BlockSpec(arr.shape, lambda i: (0, 0))

    out = pl.pallas_call(
        classifier_kernel,
        out_shape=jax.ShapeDtypeStruct((1, B_pad), jnp.float32),
        grid=grid,
        in_specs=[
            pl.BlockSpec((TB, F), lambda i: (i, 0)),        # streamed x tiles
            const_spec(folded["w1t"]), const_spec(folded["b1f"]),
            const_spec(folded["w2t"]), const_spec(folded["b2f"]),
            const_spec(folded["w3t"]), const_spec(folded["b3"]),
        ],
        out_specs=pl.BlockSpec((1, TB), lambda i: (0, i)),  # lane-dense output
        compiler_params=pltpu.CompilerParams(
            dimension_semantics=("parallel",)),
    )(x, folded["w1t"], folded["b1f"], folded["w2t"], folded["b2f"],
      folded["w3t"], folded["b3"])

    # Padded rows produce (discarded) valid sigmoid values; slice them off.
    return out.reshape(B_pad, 1)[:B]


def make_params(key, input_dim, hidden_dim):
    """Deterministic parameter init mirroring the PyTorch module's shapes."""
    h2 = hidden_dim // 2
    ks = jax.random.split(key, 6)

    def linear(kw, kb, fan_in, fan_out):
        bound = 1.0 / jnp.sqrt(fan_in)
        w = jax.random.uniform(kw, (fan_in, fan_out), jnp.float32, -bound, bound)
        b = jax.random.uniform(kb, (1, fan_out), jnp.float32, -bound, bound)
        return w, b

    w1, b1 = linear(ks[0], ks[1], input_dim, hidden_dim)
    w2, b2 = linear(ks[2], ks[3], hidden_dim, h2)
    w3, b3 = linear(ks[4], ks[5], h2, 1)

    # BatchNorm1d eval mode at init: gamma=1, beta=0, running_mean=0,
    # running_var=1, eps=1e-5 -> scale = gamma / sqrt(var + eps),
    # shift = beta - mean * scale.
    eps = 1e-5
    bn1_scale = jnp.full((1, hidden_dim), 1.0 / jnp.sqrt(1.0 + eps), jnp.float32)
    bn1_shift = jnp.zeros((1, hidden_dim), jnp.float32)
    bn2_scale = jnp.full((1, h2), 1.0 / jnp.sqrt(1.0 + eps), jnp.float32)
    bn2_shift = jnp.zeros((1, h2), jnp.float32)

    return dict(w1=w1, b1=b1, bn1_scale=bn1_scale, bn1_shift=bn1_shift,
                w2=w2, b2=b2, bn2_scale=bn2_scale, bn2_shift=bn2_shift,
                w3=w3, b3=b3)


def classifier_ref(x, p):
    """Pure-JAX f32 reference with the module's exact eval-mode semantics."""
    h = x @ p["w1"] + p["b1"]
    h = h * p["bn1_scale"] + p["bn1_shift"]
    h = jnp.maximum(h, 0.0)
    h = h @ p["w2"] + p["b2"]
    h = h * p["bn2_scale"] + p["bn2_shift"]
    h = jnp.maximum(h, 0.0)
    logits = h @ p["w3"] + p["b3"]
    return jax.nn.sigmoid(logits)


if __name__ == "__main__":
    INPUT_DIM, HIDDEN_DIM = 16, 32

    key = jax.random.PRNGKey(0)
    kp, kx = jax.random.split(key)
    params = make_params(kp, INPUT_DIM, HIDDEN_DIM)
    folded = prepare_params(params)          # one-time BN fold / transpose

    # B=8: single-tile path.  B=600: multi-step grid + ragged-batch padding.
    for B in (8, 600):
        xb = jax.random.normal(jax.random.fold_in(kx, B), (B, INPUT_DIM),
                               jnp.float32)
        out = jax.block_until_ready(classifier_forward(xb, folded))
        ref = classifier_ref(xb, params)
        assert out.shape == (B, 1), f"bad shape at B={B}: {out.shape}"
        assert jnp.allclose(out, ref, atol=1e-3, rtol=1e-3), \
            f"mismatch vs JAX reference at B={B}"

    print("KERNEL_OK")
</pallas_src>

<mosaic_0001>
module attributes {stable_mosaic.version = 11 : i64} {
  func.func @classifier_kernel(%arg0: i32, %arg1: memref<256x16xf32, #tpu.memory_space<vmem>>, %arg2: memref<32x16xf32, #tpu.memory_space<vmem>>, %arg3: memref<32x1xf32, #tpu.memory_space<vmem>>, %arg4: memref<16x32xf32, #tpu.memory_space<vmem>>, %arg5: memref<16x1xf32, #tpu.memory_space<vmem>>, %arg6: memref<1x16xf32, #tpu.memory_space<vmem>>, %arg7: memref<1x1xf32, #tpu.memory_space<vmem>>, %arg8: memref<1x256xf32, #tpu.memory_space<vmem>>) attributes {dimension_semantics = [#tpu.dimension_semantics<parallel>], iteration_bounds = array<i64: 1>, scalar_prefetch = 0 : i64, scratch_operands = 0 : i64, tpu.core_type = #tpu.core_type<tc>, window_params = [{transform_indices = @transform_0, window_bounds = array<i64: 256, 16>}, {pipeline_mode = #tpu.pipeline_mode<synchronous>, transform_indices = @transform_1, window_bounds = array<i64: 32, 16>}, {pipeline_mode = #tpu.pipeline_mode<synchronous>, transform_indices = @transform_2, window_bounds = array<i64: 32, 1>}, {pipeline_mode = #tpu.pipeline_mode<synchronous>, transform_indices = @transform_3, window_bounds = array<i64: 16, 32>}, {pipeline_mode = #tpu.pipeline_mode<synchronous>, transform_indices = @transform_4, window_bounds = array<i64: 16, 1>}, {pipeline_mode = #tpu.pipeline_mode<synchronous>, transform_indices = @transform_5, window_bounds = array<i64: 1, 16>}, {pipeline_mode = #tpu.pipeline_mode<synchronous>, transform_indices = @transform_6, window_bounds = array<i64: 1, 1>}, {transform_indices = @transform_7, window_bounds = array<i64: 1, 256>}]} {
    %c0 = arith.constant 0 : index
    %c0_0 = arith.constant 0 : index
    %0 = vector.load %arg1[%c0, %c0_0] : memref<256x16xf32, #tpu.memory_space<vmem>>, vector<256x16xf32>
    %c0_1 = arith.constant 0 : index
    %c0_2 = arith.constant 0 : index
    %1 = vector.load %arg2[%c0_1, %c0_2] : memref<32x16xf32, #tpu.memory_space<vmem>>, vector<32x16xf32>
    %cst = arith.constant dense<0.000000e+00> : vector<32x256xf32>
    %2 = tpu.matmul %1, %0, %cst {dimension_numbers = #tpu.dot_dimension_numbers<[1], [1], [0], [0], [0, 0, 1, 0], [], []>} : vector<32x16xf32>, vector<256x16xf32>, vector<32x256xf32> -> vector<32x256xf32>
    %c0_3 = arith.constant 0 : index
    %c0_4 = arith.constant 0 : index
    %3 = vector.load %arg3[%c0_3, %c0_4] : memref<32x1xf32, #tpu.memory_space<vmem>>, vector<32x1xf32>
    %4 = vector.broadcast %3 : vector<32x1xf32> to vector<32x256xf32>
    %5 = arith.addf %2, %4 : vector<32x256xf32>
    %cst_5 = arith.constant 0.000000e+00 : f32
    %6 = vector.broadcast %cst_5 : f32 to vector<32x256xf32>
    %7 = arith.maximumf %5, %6 : vector<32x256xf32>
    %c0_6 = arith.constant 0 : index
    %c0_7 = arith.constant 0 : index
    %8 = vector.load %arg4[%c0_6, %c0_7] : memref<16x32xf32, #tpu.memory_space<vmem>>, vector<16x32xf32>
    %cst_8 = arith.constant dense<0.000000e+00> : vector<16x256xf32>
    %9 = tpu.matmul %8, %7, %cst_8 {dimension_numbers = #tpu.dot_dimension_numbers<[1], [0], [0], [1], [0, 0, 1, 1], [], []>} : vector<16x32xf32>, vector<32x256xf32>, vector<16x256xf32> -> vector<16x256xf32>
    %c0_9 = arith.constant 0 : index
    %c0_10 = arith.constant 0 : index
    %10 = vector.load %arg5[%c0_9, %c0_10] : memref<16x1xf32, #tpu.memory_space<vmem>>, vector<16x1xf32>
    %11 = vector.broadcast %10 : vector<16x1xf32> to vector<16x256xf32>
    %12 = arith.addf %9, %11 : vector<16x256xf32>
    %cst_11 = arith.constant 0.000000e+00 : f32
    %13 = vector.broadcast %cst_11 : f32 to vector<16x256xf32>
    %14 = arith.maximumf %12, %13 : vector<16x256xf32>
    %c0_12 = arith.constant 0 : index
    %c0_13 = arith.constant 0 : index
    %15 = vector.load %arg6[%c0_12, %c0_13] : memref<1x16xf32, #tpu.memory_space<vmem>>, vector<1x16xf32>
    %cst_14 = arith.constant dense<0.000000e+00> : vector<1x256xf32>
    %16 = tpu.matmul %15, %14, %cst_14 {dimension_numbers = #tpu.dot_dimension_numbers<[1], [0], [0], [1], [0, 0, 1, 1], [], []>} : vector<1x16xf32>, vector<16x256xf32>, vector<1x256xf32> -> vector<1x256xf32>
    %c0_15 = arith.constant 0 : index
    %c0_16 = arith.constant 0 : index
    %17 = vector.load %arg7[%c0_15, %c0_16] : memref<1x1xf32, #tpu.memory_space<vmem>>, vector<1x1xf32>
    %18 = vector.broadcast %17 : vector<1x1xf32> to vector<1x256xf32>
    %19 = arith.addf %16, %18 : vector<1x256xf32>
    %20 = arith.negf %19 : vector<1x256xf32>
    %21 = math.exp %20 : vector<1x256xf32>
    %cst_17 = arith.constant 1.000000e+00 : f32
    %22 = vector.broadcast %cst_17 : f32 to vector<1x256xf32>
    %23 = arith.addf %22, %21 : vector<1x256xf32>
    %24 = arith.divf %22, %23 : vector<1x256xf32>
    %c0_18 = arith.constant 0 : index
    %c0_19 = arith.constant 0 : index
    %25 = vector.load %arg8[%c0_18, %c0_19] : memref<1x256xf32, #tpu.memory_space<vmem>>, vector<1x256xf32>
    tpu.vector_store %arg8[%c0_18, %c0_19], %24 {strides = array<i32>} : memref<1x256xf32, #tpu.memory_space<vmem>>, vector<1x256xf32>,
    return
  }
  func.func @transform_0(%arg0: i32) -> (i32, i32) {
    %c0_i32 = arith.constant 0 : i32
    %c0_i32_0 = arith.constant 0 : i32
    return %arg0, %c0_i32 : i32, i32
  }
  func.func @transform_1(%arg0: i32) -> (i32, i32) {
    %c0_i32 = arith.constant 0 : i32
    %c0_i32_0 = arith.constant 0 : i32
    %c0_i32_1 = arith.constant 0 : i32
    return %c0_i32, %c0_i32_0 : i32, i32
  }
  func.func @transform_2(%arg0: i32) -> (i32, i32) {
    %c0_i32 = arith.constant 0 : i32
    %c0_i32_0 = arith.constant 0 : i32
    %c0_i32_1 = arith.constant 0 : i32
    return %c0_i32, %c0_i32_0 : i32, i32
  }
  func.func @transform_3(%arg0: i32) -> (i32, i32) {
    %c0_i32 = arith.constant 0 : i32
    %c0_i32_0 = arith.constant 0 : i32
    %c0_i32_1 = arith.constant 0 : i32
    return %c0_i32, %c0_i32_0 : i32, i32
  }
  func.func @transform_4(%arg0: i32) -> (i32, i32) {
    %c0_i32 = arith.constant 0 : i32
    %c0_i32_0 = arith.constant 0 : i32
    %c0_i32_1 = arith.constant 0 : i32
    return %c0_i32, %c0_i32_0 : i32, i32
  }
  func.func @transform_5(%arg0: i32) -> (i32, i32) {
    %c0_i32 = arith.constant 0 : i32
    %c0_i32_0 = arith.constant 0 : i32
    %c0_i32_1 = arith.constant 0 : i32
    return %c0_i32, %c0_i32_0 : i32, i32
  }
  func.func @transform_6(%arg0: i32) -> (i32, i32) {
    %c0_i32 = arith.constant 0 : i32
    %c0_i32_0 = arith.constant 0 : i32
    %c0_i32_1 = arith.constant 0 : i32
    return %c0_i32, %c0_i32_0 : i32, i32
  }
  func.func @transform_7(%arg0: i32) -> (i32, i32) {
    %c0_i32 = arith.constant 0 : i32
    %c0_i32_0 = arith.constant 0 : i32
    return %c0_i32, %arg0 : i32, i32
  }
}

</mosaic_0001>

<llo_original>
// kernel: tpu_custom_call.1
$region0: #{tpu_custom_call.1}
  #allocation0 [shape = 'u32[]', space=smem, size = 0x4, offset = 0x4, fixed_abs, tag = 'smem constant byte address 0x4 - core index']
  #allocation1 [shape = 'u32[72,128]{1,0:T(1,128)}', space=vmem, size = 0x9000, scoped, tag = 'internal scratch']
  #allocation2 [shape = 'f32[1,1]{1,0:T(1,128)S(1)}', space=vmem, size = 0x200, scoped, tag = 'scoped memory for tpu_custom_call.1']
  %s0 = inlined_call_operand.vmem [shape: f32[256,16], index: 0, kind: input, shape index: {}]
  %s1 = inlined_call_operand.vmem [shape: f32[32,16], index: 1, kind: input, shape index: {}]
  %s2 = inlined_call_operand.vmem [shape: f32[32,1], index: 2, kind: input, shape index: {}]
  %s3 = inlined_call_operand.vmem [shape: f32[16,32], index: 3, kind: input, shape index: {}]
  %s4 = inlined_call_operand.vmem [shape: f32[16,1], index: 4, kind: input, shape index: {}]
  %s5 = inlined_call_operand.vmem [shape: f32[1,16], index: 5, kind: input, shape index: {}]
  %s6 = inlined_call_operand.<no memory space> [shape: f32[1,1], index: 6, kind: input, shape index: {}]
  %s7 = inlined_call_operand.hbm [shape: f32[1,256], index: 7, kind: output, shape index: {}]
  %s8 = sld [smem:[#allocation0]]
  $region38: #{tpu_custom_call.1} parent=0
    _
  %s10 = ssub.s32 1, %s8
  %s11 = scalar_select 0, %s10, %s8
  %v12 = vstv %s6
  %13 = vst [vmem:[#allocation2] sm:$0x1] %v12
  $region1: #{tpu_custom_call.1} parent=0
    #allocation3 [shape = 'u8[1024]{0}', space=vmem, size = 0x400, scoped, tag = 'output window, operand 0, single buffered']
    #allocation4 [shape = 's32[1]{0}', space=sflag, size = 0x4, scoped, tag = 'scoped memory for tpu_custom_call.1']
    %14 = vsyncpa [#allocation4], 0
    // Predicated region
    $region2: #{tpu_custom_call.1} parent=1 // pred_check
      _
    $region3: #{tpu_custom_call.1} parent=1 // pred_check_branch
      %16 = sbr.rel (0) target = $region5
    $region4: #{tpu_custom_call.1} parent=1 // pred_region
      _
    $region5: #{tpu_custom_call.1} parent=1 // pred_fallthru
      _
    // Predicated region
    $region6: #{tpu_custom_call.1} parent=1 // pred_check
      _
    $region7: #{tpu_custom_call.1} parent=1 // pred_check_branch
      %18 = sbr.rel (0) target = $region9
    $region8: #{tpu_custom_call.1} parent=1 // pred_region
      _
    $region9: #{tpu_custom_call.1} parent=1 // pred_fallthru
      _
    // Predicated region
    $region10: #{tpu_custom_call.1} parent=1 // pred_check
      _
    $region11: #{tpu_custom_call.1} parent=1 // pred_check_branch
      %20 = sbr.rel (0) target = $region13
    $region12: #{tpu_custom_call.1} parent=1 // pred_region
      _
    $region13: #{tpu_custom_call.1} parent=1 // pred_fallthru
      _
    // Predicated region
    $region14: #{tpu_custom_call.1} parent=1 // pred_check
      _
    $region15: #{tpu_custom_call.1} parent=1 // pred_check_branch
      %22 = sbr.rel (0) target = $region17
    $region16: #{tpu_custom_call.1} parent=1 // pred_region
      _
    $region17: #{tpu_custom_call.1} parent=1 // pred_fallthru
      _
    // Predicated region
    $region18: #{tpu_custom_call.1} parent=1 // pred_check
      _
    $region19: #{tpu_custom_call.1} parent=1 // pred_check_branch
      %24 = sbr.rel (0) target = $region21
    $region20: #{tpu_custom_call.1} parent=1 // pred_region
      _
    $region21: #{tpu_custom_call.1} parent=1 // pred_fallthru
      _
    // Predicated region
    $region22: #{tpu_custom_call.1} parent=1 // pred_check
      _
    $region23: #{tpu_custom_call.1} parent=1 // pred_check_branch
      %26 = sbr.rel (0) target = $region25
    $region24: #{tpu_custom_call.1} parent=1 // pred_region
      _
    $region25: #{tpu_custom_call.1} parent=1 // pred_fallthru
      _
    // Predicated region
    $region26: #{tpu_custom_call.1} parent=1 // pred_check
      _
    $region27: #{tpu_custom_call.1} parent=1 // pred_check_branch
      %28 = sbr.rel (0) target = $region29
    $region28: #{tpu_custom_call.1} parent=1 // pred_region
      _
    $region29: #{tpu_custom_call.1} parent=1 // pred_fallthru
      _
    %v29 = vld [vmem:[%s0] sm:$0xff]
    %v30 = vld [vmem:[%s0 + $0x8] sm:$0xff]
    %v31 = vld [vmem:[%s0 + $0x10] sm:$0xff]
    %v32 = vld [vmem:[%s0 + $0x18] sm:$0xff]
    %v33 = vld [vmem:[%s0 + $0x20] sm:$0xff]
    %v34 = vld [vmem:[%s0 + $0x28] sm:$0xff]
    %v35 = vld [vmem:[%s0 + $0x30] sm:$0xff]
    %v36 = vld [vmem:[%s0 + $0x38] sm:$0xff]
    %v37 = vld [vmem:[%s0 + $0x40] sm:$0xff]
    %v38 = vld [vmem:[%s0 + $0x48] sm:$0xff]
    %v39 = vld [vmem:[%s0 + $0x50] sm:$0xff]
    %v40 = vld [vmem:[%s0 + $0x58] sm:$0xff]
    %v41 = vld [vmem:[%s0 + $0x60] sm:$0xff]
    %v42 = vld [vmem:[%s0 + $0x68] sm:$0xff]
    %v43 = vld [vmem:[%s0 + $0x70] sm:$0xff]
    %v44 = vld [vmem:[%s0 + $0x78] sm:$0xff]
    %v45 = vld [vmem:[%s0 + $0x80] sm:$0xff]
    %v46 = vld [vmem:[%s0 + $0x88] sm:$0xff]
    %v47 = vld [vmem:[%s0 + $0x90] sm:$0xff]
    %v48 = vld [vmem:[%s0 + $0x98] sm:$0xff]
    %v49 = vld [vmem:[%s0 + $0xa0] sm:$0xff]
    %v50 = vld [vmem:[%s0 + $0xa8] sm:$0xff]
    %v51 = vld [vmem:[%s0 + $0xb0] sm:$0xff]
    %v52 = vld [vmem:[%s0 + $0xb8] sm:$0xff]
    %v53 = vld [vmem:[%s0 + $0xc0] sm:$0xff]
    %v54 = vld [vmem:[%s0 + $0xc8] sm:$0xff]
    %v55 = vld [vmem:[%s0 + $0xd0] sm:$0xff]
    %v56 = vld [vmem:[%s0 + $0xd8] sm:$0xff]
    %v57 = vld [vmem:[%s0 + $0xe0] sm:$0xff]
    %v58 = vld [vmem:[%s0 + $0xe8] sm:$0xff]
    %v59 = vld [vmem:[%s0 + $0xf0] sm:$0xff]
    %v60 = vld [vmem:[%s0 + $0xf8] sm:$0xff]
    %v61 = vld [vmem:[%s1] sm:$0xff]
    %v62 = vld [vmem:[%s1 + $0x8] sm:$0xff]
    %v63 = vld [vmem:[%s1 + $0x10] sm:$0xff]
    %v64 = vld [vmem:[%s1 + $0x18] sm:$0xff]
    %v65 = vld [vmem:[%s2] sm:$0xff]
    %v66 = vld [vmem:[%s2 + $0x8] sm:$0xff]
    %v67 = vld [vmem:[%s2 + $0x10] sm:$0xff]
    %v68 = vld [vmem:[%s2 + $0x18] sm:$0xff]
    %70 = vset.pattern.permute.xlu0 0
    %71 = vperm.xlu0 %70, %v65
    %v72 = vpop.permute.xlu0 %71
    %75 = vset.pattern.permute.xlu0 0
    %76 = vperm.xlu0 %75, %v66
    %v77 = vpop.permute.xlu0 %76
    %80 = vset.pattern.permute.xlu0 0
    %81 = vperm.xlu0 %80, %v67
    %v82 = vpop.permute.xlu0 %81
    %85 = vset.pattern.permute.xlu0 0
    %86 = vperm.xlu0 %85, %v68
    %v87 = vpop.permute.xlu0 %86
    %vm89 = vcmask 130048
    %v91 = vsel %vm89, %v61, 0
    %v94 = vsel %vm89, %v62, 0
    %v97 = vsel %vm89, %v63, 0
    %v100 = vsel %vm89, %v64, 0
    %v103 = vsel %vm89, %v29, 0
    %v106 = vsel %vm89, %v30, 0
    %v109 = vsel %vm89, %v31, 0
    %v112 = vsel %vm89, %v32, 0
    %v115 = vsel %vm89, %v33, 0
    %v118 = vsel %vm89, %v34, 0
    %v121 = vsel %vm89, %v35, 0
    %v124 = vsel %vm89, %v36, 0
    %v127 = vsel %vm89, %v37, 0
    %v130 = vsel %vm89, %v38, 0
    %v133 = vsel %vm89, %v39, 0
    %v136 = vsel %vm89, %v40, 0
    %v139 = vsel %vm89, %v41, 0
    %v142 = vsel %vm89, %v42, 0
    %v145 = vsel %vm89, %v43, 0
    %v148 = vsel %vm89, %v44, 0
    %v151 = vsel %vm89, %v45, 0
    %v154 = vsel %vm89, %v46, 0
    %v157 = vsel %vm89, %v47, 0
    %v160 = vsel %vm89, %v48, 0
    %v163 = vsel %vm89, %v49, 0
    %v166 = vsel %vm89, %v50, 0
    %v169 = vsel %vm89, %v51, 0
    %v172 = vsel %vm89, %v52, 0
    %v175 = vsel %vm89, %v53, 0
    %v178 = vsel %vm89, %v54, 0
    %v181 = vsel %vm89, %v55, 0
    %v184 = vsel %vm89, %v56, 0
    %v187 = vsel %vm89, %v57, 0
    %v190 = vsel %vm89, %v58, 0
    %v193 = vsel %vm89, %v59, 0
    %v196 = vsel %vm89, %v60, 0
    %198 = vmatpush.xpose.msra.mxu0 %v148
    %199 = vmatpush.xpose.msra.mxu0 %v145
    %200 = vmatpush.xpose.msra.mxu0 %v142
    %201 = vmatpush.xpose.msra.mxu0 %v139
    %202 = vmatpush.xpose.msra.mxu0 %v136
    %203 = vmatpush.xpose.msra.mxu0 %v133
    %204 = vmatpush.xpose.msra.mxu0 %v130
    %205 = vmatpush.xpose.msra.mxu0 %v127
    %206 = vmatpush.xpose.msra.mxu0 %v124
    %207 = vmatpush.xpose.msra.mxu0 %v121
    %208 = vmatpush.xpose.msra.mxu0 %v118
    %209 = vmatpush.xpose.msra.mxu0 %v115
    %210 = vmatpush.xpose.msra.mxu0 %v112
    %211 = vmatpush.xpose.msra.mxu0 %v109
    %212 = vmatpush.xpose.msra.mxu0 %v106
    %213 = vmatpush.xpose.msra.mxu0 %v103
    %214 = vmatmul.f32.gmra.mxu0 %v91
    %v215 = vpop.f32.mrf.mxu0
    %v216 = vadd.f32 %v72, %v215
    %217 = vmatmul.f32.gmra.mxu0 %v94
    %v218 = vpop.f32.mrf.mxu0
    %v219 = vadd.f32 %v77, %v218
    %220 = vmatmul.f32.gmra.mxu0 %v97
    %v221 = vpop.f32.mrf.mxu0
    %v222 = vadd.f32 %v82, %v221
    %223 = vmatmul.f32.gmra.mxu0 %v100
    %v224 = vpop.f32.mrf.mxu0
    %v225 = vadd.f32 %v87, %v224
    %226 = vdwg.mxu0
    %227 = vmatpush.xpose.msra.mxu0 %v196
    %228 = vmatpush.xpose.msra.mxu0 %v193
    %229 = vmatpush.xpose.msra.mxu0 %v190
    %230 = vmatpush.xpose.msra.mxu0 %v187
    %231 = vmatpush.xpose.msra.mxu0 %v184
    %232 = vmatpush.xpose.msra.mxu0 %v181
    %233 = vmatpush.xpose.msra.mxu0 %v178
    %234 = vmatpush.xpose.msra.mxu0 %v175
    %235 = vmatpush.xpose.msra.mxu0 %v172
    %236 = vmatpush.xpose.msra.mxu0 %v169
    %237 = vmatpush.xpose.msra.mxu0 %v166
    %238 = vmatpush.xpose.msra.mxu0 %v163
    %239 = vmatpush.xpose.msra.mxu0 %v160
    %240 = vmatpush.xpose.msra.mxu0 %v157
    %241 = vmatpush.xpose.msra.mxu0 %v154
    %242 = vmatpush.xpose.msra.mxu0 %v151
    %243 = vmatmul.f32.gmra.mxu0 %v91
    %v244 = vpop.f32.mrf.mxu0
    %v245 = vadd.f32 %v72, %v244
    %246 = vmatmul.f32.gmra.mxu0 %v94
    %v247 = vpop.f32.mrf.mxu0
    %v248 = vadd.f32 %v77, %v247
    %249 = vmatmul.f32.gmra.mxu0 %v97
    %v250 = vpop.f32.mrf.mxu0
    %v251 = vadd.f32 %v82, %v250
    %252 = vmatmul.f32.gmra.mxu0 %v100
    %v253 = vpop.f32.mrf.mxu0
    %v254 = vadd.f32 %v87, %v253
    %255 = vdwg.mxu0
    %v256 = vmax.f32 %v216, 0.0
    %v257 = vmax.f32 %v245, 0.0
    %v258 = vmax.f32 %v219, 0.0
    %v259 = vmax.f32 %v248, 0.0
    %v260 = vmax.f32 %v222, 0.0
    %v261 = vmax.f32 %v251, 0.0
    %v262 = vmax.f32 %v225, 0.0
    %v263 = vmax.f32 %v254, 0.0
    %v264 = vld [vmem:[%s3] sm:$0xff]
    %v265 = vld [vmem:[%s3 + $0x8] sm:$0xff]
    %v266 = vld [vmem:[%s4] sm:$0xff]
    %v267 = vld [vmem:[%s4 + $0x8] sm:$0xff]
    %269 = vset.pattern.permute.xlu0 0
    %270 = vperm.xlu0 %269, %v266
    %v271 = vpop.permute.xlu0 %270
    %274 = vset.pattern.permute.xlu0 0
    %275 = vperm.xlu0 %274, %v267
    %v276 = vpop.permute.xlu0 %275
    %vm278 = vcmask 261120
    %v280 = vsel %vm278, %v264, 0
    %v283 = vsel %vm278, %v265, 0
    %285 = vmatpush.msra.mxu0 0.0
    %286 = vmatpush.msra.mxu0 0.0
    %287 = vmatpush.msra.mxu0 0.0
    %288 = vmatpush.msra.mxu0 0.0
    %289 = vmatpush.msra.mxu0 0.0
    %290 = vmatpush.msra.mxu0 0.0
    %291 = vmatpush.msra.mxu0 0.0
    %292 = vmatpush.msra.mxu0 0.0
    %293 = vmatpush.msra.mxu0 0.0
    %294 = vmatpush.msra.mxu0 0.0
    %295 = vmatpush.msra.mxu0 0.0
    %296 = vmatpush.msra.mxu0 0.0
    %297 = vmatpush.msra.mxu0 %v262
    %298 = vmatpush.msra.mxu0 %v260
    %299 = vmatpush.msra.mxu0 %v258
    %300 = vmatpush.msra.mxu0 %v256
    %301 = vmatmul.f32.gmra.mxu0 %v280
    %v302 = vpop.f32.mrf.mxu0
    %v303 = vadd.f32 %v271, %v302
    %304 = vmatmul.f32.gmra.mxu0 %v283
    %v305 = vpop.f32.mrf.mxu0
    %v306 = vadd.f32 %v276, %v305
    %307 = vdwg.mxu0
    %308 = vmatpush.msra.mxu0 0.0
    %309 = vmatpush.msra.mxu0 0.0
    %310 = vmatpush.msra.mxu0 0.0
    %311 = vmatpush.msra.mxu0 0.0
    %312 = vmatpush.msra.mxu0 0.0
    %313 = vmatpush.msra.mxu0 0.0
    %314 = vmatpush.msra.mxu0 0.0
    %315 = vmatpush.msra.mxu0 0.0
    %316 = vmatpush.msra.mxu0 0.0
    %317 = vmatpush.msra.mxu0 0.0
    %318 = vmatpush.msra.mxu0 0.0
    %319 = vmatpush.msra.mxu0 0.0
    %320 = vmatpush.msra.mxu0 %v263
    %321 = vmatpush.msra.mxu0 %v261
    %322 = vmatpush.msra.mxu0 %v259
    %323 = vmatpush.msra.mxu0 %v257
    %324 = vmatmul.f32.gmra.mxu0 %v280
    %v325 = vpop.f32.mrf.mxu0
    %v326 = vadd.f32 %v271, %v325
    %327 = vmatmul.f32.gmra.mxu0 %v283
    %v328 = vpop.f32.mrf.mxu0
    %v329 = vadd.f32 %v276, %v328
    %330 = vdwg.mxu0
    %v331 = vmax.f32 %v303, 0.0
    %v332 = vmax.f32 %v326, 0.0
    %v333 = vmax.f32 %v306, 0.0
    %v334 = vmax.f32 %v329, 0.0
    %v335 = vld [vmem:[%s5] sm:$0x1]
    %v336 = vld [vmem:[#allocation2] sm:$0x1]
    %338 = vset.pattern.permute.xlu0 0
    %339 = vperm.xlu0 %338, %v336
    %v340 = vpop.permute.xlu0 %339
    %v342 = vperm.slane %v340, 0
    %v344 = vsel %vm89, %v335, 0
    %346 = vmatpush.msra.mxu0 0.0
    %347 = vmatpush.msra.mxu0 0.0
    %348 = vmatpush.msra.mxu0 0.0
    %349 = vmatpush.msra.mxu0 0.0
    %350 = vmatpush.msra.mxu0 0.0
    %351 = vmatpush.msra.mxu0 0.0
    %352 = vmatpush.msra.mxu0 0.0
    %353 = vmatpush.msra.mxu0 0.0
    %354 = vmatpush.msra.mxu0 0.0
    %355 = vmatpush.msra.mxu0 0.0
    %356 = vmatpush.msra.mxu0 0.0
    %357 = vmatpush.msra.mxu0 0.0
    %358 = vmatpush.msra.mxu0 0.0
    %359 = vmatpush.msra.mxu0 0.0
    %360 = vmatpush.msra.mxu0 %v333
    %361 = vmatpush.msra.mxu0 %v331
    %362 = vmatmul.f32.gmra.mxu0 %v344
    %v363 = vpop.f32.mrf.mxu0
    %v364 = vadd.f32 %v342, %v363
    %365 = vdwg.mxu0
    %366 = vmatpush.msra.mxu0 0.0
    %367 = vmatpush.msra.mxu0 0.0
    %368 = vmatpush.msra.mxu0 0.0
    %369 = vmatpush.msra.mxu0 0.0
    %370 = vmatpush.msra.mxu0 0.0
    %371 = vmatpush.msra.mxu0 0.0
    %372 = vmatpush.msra.mxu0 0.0
    %373 = vmatpush.msra.mxu0 0.0
    %374 = vmatpush.msra.mxu0 0.0
    %375 = vmatpush.msra.mxu0 0.0
    %376 = vmatpush.msra.mxu0 0.0
    %377 = vmatpush.msra.mxu0 0.0
    %378 = vmatpush.msra.mxu0 0.0
    %379 = vmatpush.msra.mxu0 0.0
    %380 = vmatpush.msra.mxu0 %v334
    %381 = vmatpush.msra.mxu0 %v332
    %382 = vmatmul.f32.gmra.mxu0 %v344
    %v383 = vpop.f32.mrf.mxu0
    %v384 = vadd.f32 %v342, %v383
    %385 = vdwg.mxu0
    %v386 = vxor.u32 %v364, 2147483648
    %v387 = vxor.u32 %v384, 2147483648
    %v388 = vmul.f32 %v386, 1.442695
    %v389 = vpow.pop %v388
    %v390 = vmul.f32 %v387, 1.442695
    %v391 = vpow.pop %v390
    %v392 = vadd.f32 %v389, 1.0
    %v393 = vadd.f32 %v391, 1.0
    %v394 = vrcp.pop %v392
    %v395 = vmul.f32 %v392, %v394
    %v396 = vsub.f32 1.0, %v395
    %v397 = vmul.f32 %v394, %v396
    %v398 = vadd.f32 %v394, %v397
    %vm399 = vweird.f32 %v392
    %vm400 = vweird.f32 %v394
    %vm401 = vmor %vm399, %vm400
    %v402 = vsel %vm401, %v394, %v398
    %v403 = vand.u32 2147483647, %v392
    %vm404 = vcmp.eq.f32.partialorder %v403, 8.507059e+37
    %v405 = vand.u32 %v392, 2147483648
    %v406 = vor.u32 1.1754944e-38, %v405
    %v407 = vsel %vm404, %v406, %v402
    %v408 = vmul.f32 1.0, %v407
    %v409 = vrcp.pop %v393
    %v410 = vmul.f32 %v393, %v409
    %v411 = vsub.f32 1.0, %v410
    %v412 = vmul.f32 %v409, %v411
    %v413 = vadd.f32 %v409, %v412
    %vm414 = vweird.f32 %v393
    %vm415 = vweird.f32 %v409
    %vm416 = vmor %vm414, %vm415
    %v417 = vsel %vm416, %v409, %v413
    %v418 = vand.u32 2147483647, %v393
    %vm419 = vcmp.eq.f32.partialorder %v418, 8.507059e+37
    %v420 = vand.u32 %v393, 2147483648
    %v421 = vor.u32 1.1754944e-38, %v420
    %v422 = vsel %vm419, %v421, %v417
    %v423 = vmul.f32 1.0, %v422
    %v426 = vrot.slane %v423, 7
    %vm427 = vcmask 1040384
    %v428 = vsel %vm427, %v408, %v426
    %v430 = vlaneseq
    %vm431 = vcmp.ge.s32.totalorder %v430, 0
    %vm432 = vcmp.lt.s32.totalorder %v430, 256
    %vm433 = vmand %vm431, %vm432
    %434 = vst.msk [vmem:[#allocation3] sm:$0x3] %vm433, %v428
    // Predicated region
    $region30: #{tpu_custom_call.1} parent=1 // pred_check
      _
    $region31: #{tpu_custom_call.1} parent=1 // pred_check_branch
      %436 = sbr.rel (0) target = $region33
    $region32: #{tpu_custom_call.1} parent=1 // pred_region
      %438 = vsyncadd [#allocation4], 0
      %s440 = sshll.u32 [#allocation3], 4
      %s441 = int_to_ptr.vmem [resolvable:$true] %s440
      %s442 = sshll.u32 %s7, 4
      %s443 = int_to_ptr.hbm [resolvable:$true] %s442
      %445 = dma.vmem_to_hbm [thread:$0]  %s441, 32, %s443, [#allocation4]
    $region33: #{tpu_custom_call.1} parent=1 // pred_fallthru
      _
    // Predicated region
    $region34: #{tpu_custom_call.1} parent=1 // pred_check
      _
    $region35: #{tpu_custom_call.1} parent=1 // pred_check_branch
      %447 = sbr.rel (0) target = $region37
    $region36: #{tpu_custom_call.1} parent=1 // pred_region
      %449 = dma.done [#allocation4], 32
    $region37: #{tpu_custom_call.1} parent=1 // pred_fallthru
      _
    %450 = vsyncpa [#allocation4], 1

</llo_original>
